<compile_context>
chip_gen: v5e
topology: v5e:2x2
jax: 0.10.0
libtpu: 0.0.40
codegen_flags: <defaults>
</compile_context>

<pallas_src>
import functools

import jax
import jax.numpy as jnp
from jax.experimental import pallas as pl
from jax.experimental.pallas import tpu as pltpu

LANE = 128             # lane width (last dim)
SUBLANE_F32 = 8        # f32 sublane height
SUBLANE_BF16 = 16      # bf16 packs two rows per sublane
MAX_BATCH_TILE = 1024  # big tiles amortize per-grid-step overhead (v5e/v6e)
MIN_SPLIT_BATCH = 256  # batches >= this get >=2 grid steps (v7x has 2 TCs)


def _cdiv(a, b):
    return -(-a // b)


def _round_up(x, m):
    return _cdiv(x, m) * m


def _pad2d(a, rows, cols):
    return jnp.pad(a, ((0, rows - a.shape[0]), (0, cols - a.shape[1])))


def _choose_tiling(batch, sublane):
    """Pick (batch_tile, padded_batch, num_tiles) without ballooning padding."""
    num_tiles = _cdiv(batch, MAX_BATCH_TILE)
    if num_tiles == 1 and batch >= MIN_SPLIT_BATCH:
        num_tiles = 2                      # let both v7x TensorCores work
    tb = _round_up(_cdiv(batch, num_tiles), sublane)
    return tb, tb * num_tiles, num_tiles


def _make_mlp_kernel(precision):
    def kernel(x_ref, w1_ref, b1_ref, w2_ref, b2_ref, w3_ref, b3_ref, o_ref):
        def mm(a, w_ref):
            w = w_ref[...]
            # Cast activations to the (pre-cast) weight dtype; accumulate f32.
            return jnp.dot(a.astype(w.dtype), w,
                           preferred_element_type=jnp.float32,
                           precision=precision)

        # Epilogue (bias add + ReLU) stays f32 on the VPU (v5e has no bf16 VPU).
        h = jnp.maximum(mm(x_ref[...], w1_ref) + b1_ref[...], 0.0)
        h = jnp.maximum(mm(h, w2_ref) + b2_ref[...], 0.0)
        o_ref[...] = mm(h, w3_ref) + b3_ref[...]

    return kernel


def prepare_params(w1, b1, w2, b2, w3, b3, *, use_bf16=False):
    """Pad (and optionally bf16-cast) the parameters ONCE, outside the forward.

    Weights: [in, out], zero-padded to tile-aligned shapes (exact: ReLU(0)=0,
    zero K-columns contribute 0).  Biases stay f32 (epilogue runs on the VPU).
    """
    obs, hidden = w1.shape
    action = w3.shape[1]
    obs_p = _round_up(obs, SUBLANE_BF16 if use_bf16 else SUBLANE_F32)
    hid_p = _round_up(hidden, LANE)
    act_p = _round_up(action, LANE)
    wdt = jnp.bfloat16 if use_bf16 else jnp.float32
    w1p = _pad2d(w1, obs_p, hid_p).astype(wdt)
    w2p = _pad2d(w2, hid_p, hid_p).astype(wdt)
    w3p = _pad2d(w3, hid_p, act_p).astype(wdt)
    b1p = _pad2d(b1, 1, hid_p).astype(jnp.float32)
    b2p = _pad2d(b2, 1, hid_p).astype(jnp.float32)
    b3p = _pad2d(b3, 1, act_p).astype(jnp.float32)
    return (w1p, b1p, w2p, b2p, w3p, b3p)


@functools.partial(jax.jit, static_argnames=("action_size", "precision"))
def mlp_forward(x, params, *, action_size, precision=None):
    """x: (batch, obs) f32; params: output of prepare_params (already padded)."""
    w1, b1, w2, b2, w3, b3 = params
    batch, obs = x.shape
    obs_p, hid_p = w1.shape
    act_p = w3.shape[1]
    use_bf16 = w1.dtype == jnp.bfloat16

    sublane = SUBLANE_BF16 if use_bf16 else SUBLANE_F32
    tb, b_p, num_tiles = _choose_tiling(batch, sublane)

    # Only the batch rows (and, if needed, a few feature cols up to obs_p) of x
    # get padded per call; the feature dim stays narrow (no 16->128 blow-up).
    xp = _pad2d(x, b_p, obs_p)
    if use_bf16:
        xp = xp.astype(jnp.bfloat16)

    # Advisory cost so XLA schedules around the (tiny) kernel.
    flops = 2 * b_p * (obs_p * hid_p + hid_p * hid_p + hid_p * act_p)
    bytes_accessed = (xp.size * xp.dtype.itemsize
                      + sum(int(a.size) * a.dtype.itemsize for a in params)
                      + b_p * act_p * 4)
    cost = pl.CostEstimate(flops=flops, transcendentals=0,
                           bytes_accessed=bytes_accessed)

    out = pl.pallas_call(
        _make_mlp_kernel(precision),
        out_shape=jax.ShapeDtypeStruct((b_p, act_p), jnp.float32),
        grid_spec=pltpu.PrefetchScalarGridSpec(
            num_scalar_prefetch=0,
            grid=(num_tiles,),
            in_specs=[
                # Activation tile: walks the batch, double-buffered by Pallas.
                pl.BlockSpec((tb, obs_p), lambda i: (i, 0)),
                # Weights / biases: constant index_map -> VMEM-resident.
                pl.BlockSpec((obs_p, hid_p), lambda i: (0, 0)),
                pl.BlockSpec((1, hid_p), lambda i: (0, 0)),
                pl.BlockSpec((hid_p, hid_p), lambda i: (0, 0)),
                pl.BlockSpec((1, hid_p), lambda i: (0, 0)),
                pl.BlockSpec((hid_p, act_p), lambda i: (0, 0)),
                pl.BlockSpec((1, act_p), lambda i: (0, 0)),
            ],
            # Lane-dense (128-wide) output block -> unmasked vst; wrapper slices.
            out_specs=pl.BlockSpec((tb, act_p), lambda i: (i, 0)),
        ),
        compiler_params=pltpu.CompilerParams(
            dimension_semantics=("parallel",)),
        cost_estimate=cost,
    )(xp, *params)

    return out[:batch, :action_size]


def xavier_uniform(key, fan_in, fan_out):
    # Matches torch.nn.init.xavier_uniform_ (gain=1.0); stored as [in, out].
    limit = jnp.sqrt(6.0 / (fan_in + fan_out))
    return jax.random.uniform(key, (fan_in, fan_out), jnp.float32, -limit, limit)


def linear_bias(key, fan_in, fan_out):
    # PyTorch nn.Linear default bias init: U(-1/sqrt(fan_in), 1/sqrt(fan_in)).
    bound = 1.0 / jnp.sqrt(fan_in)
    return jax.random.uniform(key, (1, fan_out), jnp.float32, -bound, bound)


def ref_forward(x, w1, b1, w2, b2, w3, b3):
    hp = jax.lax.Precision.HIGHEST
    h = jnp.maximum(jnp.dot(x, w1, precision=hp) + b1, 0.0)
    h = jnp.maximum(jnp.dot(h, w2, precision=hp) + b2, 0.0)
    return jnp.dot(h, w3, precision=hp) + b3


if __name__ == "__main__":
    observation_size = 16
    action_size = 4
    hidden = 100
    batch = 2

    key = jax.random.PRNGKey(0)
    kx, k1, k2, k3, kb1, kb2, kb3, kx2 = jax.random.split(key, 8)

    x = jax.random.normal(kx, (batch, observation_size), jnp.float32)
    w1 = xavier_uniform(k1, observation_size, hidden)
    b1 = linear_bias(kb1, observation_size, hidden)
    w2 = xavier_uniform(k2, hidden, hidden)
    b2 = linear_bias(kb2, hidden, hidden)
    w3 = xavier_uniform(k3, hidden, action_size)
    b3 = linear_bias(kb3, hidden, action_size)

    raw = (w1, b1, w2, b2, w3, b3)
    params_f32 = prepare_params(*raw)                 # padded once (f32)
    params_bf16 = prepare_params(*raw, use_bf16=True)  # padded + cast once

    ref = ref_forward(x, *raw)

    # Exactness check of padding/tiling logic (HIGHEST = true-f32 MXU path).
    out_exact = mlp_forward(x, params_f32, action_size=action_size,
                            precision=jax.lax.Precision.HIGHEST)
    jax.block_until_ready(out_exact)
    assert out_exact.shape == (batch, action_size)
    assert jnp.allclose(out_exact, ref, atol=1e-5, rtol=1e-5)

    # Fast default-precision f32 path (single-pass MXU, the recommended default).
    out_fast = mlp_forward(x, params_f32, action_size=action_size)
    jax.block_until_ready(out_fast)
    assert jnp.allclose(out_fast, ref, atol=5e-2, rtol=5e-2)

    # Larger batch: exercises the multi-tile grid (2 tiles of 152 rows).
    x_big = jax.random.normal(kx2, (300, observation_size), jnp.float32)
    ref_big = ref_forward(x_big, *raw)
    out_big = mlp_forward(x_big, params_f32, action_size=action_size)
    jax.block_until_ready(out_big)
    assert out_big.shape == (300, action_size)
    assert jnp.allclose(out_big, ref_big, atol=5e-2, rtol=5e-2)

    # bf16 MXU fast path (weights pre-cast in prepare_params, f32 accumulation).
    out_bf16 = mlp_forward(x_big, params_bf16, action_size=action_size)
    jax.block_until_ready(out_bf16)
    assert jnp.allclose(out_bf16, ref_big, atol=5e-2, rtol=5e-2)

    print("KERNEL_OK")
</pallas_src>

<mosaic_0001>
module attributes {stable_mosaic.version = 11 : i64} {
  func.func @kernel(%arg0: i32, %arg1: memref<8x16xf32, #tpu.memory_space<vmem>>, %arg2: memref<16x128xf32, #tpu.memory_space<vmem>>, %arg3: memref<1x128xf32, #tpu.memory_space<vmem>>, %arg4: memref<128x128xf32, #tpu.memory_space<vmem>>, %arg5: memref<1x128xf32, #tpu.memory_space<vmem>>, %arg6: memref<128x128xf32, #tpu.memory_space<vmem>>, %arg7: memref<1x128xf32, #tpu.memory_space<vmem>>, %arg8: memref<8x128xf32, #tpu.memory_space<vmem>>) attributes {dimension_semantics = [#tpu.dimension_semantics<parallel>], iteration_bounds = array<i64: 1>, scalar_prefetch = 0 : i64, scratch_operands = 0 : i64, tpu.core_type = #tpu.core_type<tc>, window_params = [{transform_indices = @transform_0, window_bounds = array<i64: 8, 16>}, {pipeline_mode = #tpu.pipeline_mode<synchronous>, transform_indices = @transform_1, window_bounds = array<i64: 16, 128>}, {pipeline_mode = #tpu.pipeline_mode<synchronous>, transform_indices = @transform_2, window_bounds = array<i64: 1, 128>}, {pipeline_mode = #tpu.pipeline_mode<synchronous>, transform_indices = @transform_3, window_bounds = array<i64: 128, 128>}, {pipeline_mode = #tpu.pipeline_mode<synchronous>, transform_indices = @transform_4, window_bounds = array<i64: 1, 128>}, {pipeline_mode = #tpu.pipeline_mode<synchronous>, transform_indices = @transform_5, window_bounds = array<i64: 128, 128>}, {pipeline_mode = #tpu.pipeline_mode<synchronous>, transform_indices = @transform_6, window_bounds = array<i64: 1, 128>}, {transform_indices = @transform_7, window_bounds = array<i64: 8, 128>}]} {
    %c0 = arith.constant 0 : index
    %c0_0 = arith.constant 0 : index
    %0 = vector.load %arg1[%c0, %c0_0] : memref<8x16xf32, #tpu.memory_space<vmem>>, vector<8x16xf32>
    %c0_1 = arith.constant 0 : index
    %c0_2 = arith.constant 0 : index
    %1 = vector.load %arg2[%c0_1, %c0_2] : memref<16x128xf32, #tpu.memory_space<vmem>>, vector<16x128xf32>
    %cst = arith.constant dense<0.000000e+00> : vector<8x128xf32>
    %2 = tpu.matmul %0, %1, %cst {dimension_numbers = #tpu.dot_dimension_numbers<[1], [0], [0], [1], [0, 0, 1, 1], [], []>, precision = #tpu.contract_precision<fp32>} : vector<8x16xf32>, vector<16x128xf32>, vector<8x128xf32> -> vector<8x128xf32>
    %c0_3 = arith.constant 0 : index
    %c0_4 = arith.constant 0 : index
    %3 = vector.load %arg3[%c0_3, %c0_4] : memref<1x128xf32, #tpu.memory_space<vmem>>, vector<1x128xf32>
    %4 = vector.broadcast %3 : vector<1x128xf32> to vector<8x128xf32>
    %5 = arith.addf %2, %4 : vector<8x128xf32>
    %cst_5 = arith.constant 0.000000e+00 : f32
    %6 = vector.broadcast %cst_5 : f32 to vector<8x128xf32>
    %7 = arith.maximumf %5, %6 : vector<8x128xf32>
    %c0_6 = arith.constant 0 : index
    %c0_7 = arith.constant 0 : index
    %8 = vector.load %arg4[%c0_6, %c0_7] : memref<128x128xf32, #tpu.memory_space<vmem>>, vector<128x128xf32>
    %cst_8 = arith.constant dense<0.000000e+00> : vector<8x128xf32>
    %9 = tpu.matmul %7, %8, %cst_8 {dimension_numbers = #tpu.dot_dimension_numbers<[1], [0], [0], [1], [0, 0, 1, 1], [], []>, precision = #tpu.contract_precision<fp32>} : vector<8x128xf32>, vector<128x128xf32>, vector<8x128xf32> -> vector<8x128xf32>
    %c0_9 = arith.constant 0 : index
    %c0_10 = arith.constant 0 : index
    %10 = vector.load %arg5[%c0_9, %c0_10] : memref<1x128xf32, #tpu.memory_space<vmem>>, vector<1x128xf32>
    %11 = vector.broadcast %10 : vector<1x128xf32> to vector<8x128xf32>
    %12 = arith.addf %9, %11 : vector<8x128xf32>
    %cst_11 = arith.constant 0.000000e+00 : f32
    %13 = vector.broadcast %cst_11 : f32 to vector<8x128xf32>
    %14 = arith.maximumf %12, %13 : vector<8x128xf32>
    %c0_12 = arith.constant 0 : index
    %c0_13 = arith.constant 0 : index
    %15 = vector.load %arg6[%c0_12, %c0_13] : memref<128x128xf32, #tpu.memory_space<vmem>>, vector<128x128xf32>
    %cst_14 = arith.constant dense<0.000000e+00> : vector<8x128xf32>
    %16 = tpu.matmul %14, %15, %cst_14 {dimension_numbers = #tpu.dot_dimension_numbers<[1], [0], [0], [1], [0, 0, 1, 1], [], []>, precision = #tpu.contract_precision<fp32>} : vector<8x128xf32>, vector<128x128xf32>, vector<8x128xf32> -> vector<8x128xf32>
    %c0_15 = arith.constant 0 : index
    %c0_16 = arith.constant 0 : index
    %17 = vector.load %arg7[%c0_15, %c0_16] : memref<1x128xf32, #tpu.memory_space<vmem>>, vector<1x128xf32>
    %18 = vector.broadcast %17 : vector<1x128xf32> to vector<8x128xf32>
    %19 = arith.addf %16, %18 : vector<8x128xf32>
    %c0_17 = arith.constant 0 : index
    %c0_18 = arith.constant 0 : index
    %20 = vector.load %arg8[%c0_17, %c0_18] : memref<8x128xf32, #tpu.memory_space<vmem>>, vector<8x128xf32>
    tpu.vector_store %arg8[%c0_17, %c0_18], %19 {strides = array<i32>} : memref<8x128xf32, #tpu.memory_space<vmem>>, vector<8x128xf32>,
    return
  }
  func.func @transform_0(%arg0: i32) -> (i32, i32) {
    %c0_i32 = arith.constant 0 : i32
    %c0_i32_0 = arith.constant 0 : i32
    return %arg0, %c0_i32 : i32, i32
  }
  func.func @transform_1(%arg0: i32) -> (i32, i32) {
    %c0_i32 = arith.constant 0 : i32
    %c0_i32_0 = arith.constant 0 : i32
    %c0_i32_1 = arith.constant 0 : i32
    return %c0_i32, %c0_i32_0 : i32, i32
  }
  func.func @transform_2(%arg0: i32) -> (i32, i32) {
    %c0_i32 = arith.constant 0 : i32
    %c0_i32_0 = arith.constant 0 : i32
    %c0_i32_1 = arith.constant 0 : i32
    return %c0_i32, %c0_i32_0 : i32, i32
  }
  func.func @transform_3(%arg0: i32) -> (i32, i32) {
    %c0_i32 = arith.constant 0 : i32
    %c0_i32_0 = arith.constant 0 : i32
    %c0_i32_1 = arith.constant 0 : i32
    return %c0_i32, %c0_i32_0 : i32, i32
  }
  func.func @transform_4(%arg0: i32) -> (i32, i32) {
    %c0_i32 = arith.constant 0 : i32
    %c0_i32_0 = arith.constant 0 : i32
    %c0_i32_1 = arith.constant 0 : i32
    return %c0_i32, %c0_i32_0 : i32, i32
  }
  func.func @transform_5(%arg0: i32) -> (i32, i32) {
    %c0_i32 = arith.constant 0 : i32
    %c0_i32_0 = arith.constant 0 : i32
    %c0_i32_1 = arith.constant 0 : i32
    return %c0_i32, %c0_i32_0 : i32, i32
  }
  func.func @transform_6(%arg0: i32) -> (i32, i32) {
    %c0_i32 = arith.constant 0 : i32
    %c0_i32_0 = arith.constant 0 : i32
    %c0_i32_1 = arith.constant 0 : i32
    return %c0_i32, %c0_i32_0 : i32, i32
  }
  func.func @transform_7(%arg0: i32) -> (i32, i32) {
    %c0_i32 = arith.constant 0 : i32
    %c0_i32_0 = arith.constant 0 : i32
    return %arg0, %c0_i32 : i32, i32
  }
}

</mosaic_0001>

<llo_original>
// kernel: mlp_forward.1
$region0: #{mlp_forward.1}
  #allocation0 [shape = 'u32[]', space=smem, size = 0x4, offset = 0x4, fixed_abs, tag = 'smem constant byte address 0x4 - core index']
  #allocation1 [shape = 'u32[72,128]{1,0:T(1,128)}', space=vmem, size = 0x9000, scoped, tag = 'internal scratch']
  %s0 = inlined_call_operand.vmem [shape: f32[8,16], index: 0, kind: input, shape index: {}]
  %s1 = inlined_call_operand.hbm [shape: f32[16,128], index: 1, kind: input, shape index: {}]
  %s2 = inlined_call_operand.vmem [shape: f32[1,128], index: 2, kind: input, shape index: {}]
  %s3 = inlined_call_operand.hbm [shape: f32[128,128], index: 3, kind: input, shape index: {}]
  %s4 = inlined_call_operand.vmem [shape: f32[1,128], index: 4, kind: input, shape index: {}]
  %s5 = inlined_call_operand.hbm [shape: f32[128,128], index: 5, kind: input, shape index: {}]
  %s6 = inlined_call_operand.vmem [shape: f32[1,128], index: 6, kind: input, shape index: {}]
  %s7 = inlined_call_operand.vmem [shape: f32[8,128], index: 7, kind: output, shape index: {}]
  %s8 = sld [smem:[#allocation0]]
  $region50: #{mlp_forward.1} parent=0
    _
  %s10 = ssub.s32 1, %s8
  %s11 = scalar_select 0, %s10, %s8
  $region1: #{mlp_forward.1} parent=0
    #allocation2 [shape = 'u8[8192]{0}', space=vmem, size = 0x2000, scoped, tag = 'input window, operand 1, single buffered']
    #allocation3 [shape = 's32[1]{0}', space=sflag, size = 0x4, scoped, tag = 'scoped memory for mlp_forward.1']
    #allocation4 [shape = 'u8[65536]{0}', space=vmem, size = 0x10000, scoped, tag = 'input window, operand 3, single buffered']
    #allocation5 [shape = 's32[1]{0}', space=sflag, size = 0x4, scoped, tag = 'scoped memory for mlp_forward.1']
    #allocation6 [shape = 'u8[65536]{0}', space=vmem, size = 0x10000, scoped, tag = 'input window, operand 5, single buffered']
    %12 = vsyncpa [#allocation3], 0
    %13 = vsyncpa [#allocation5], 0
    // Predicated region
    $region2: #{mlp_forward.1} parent=1 // pred_check
      _
    $region3: #{mlp_forward.1} parent=1 // pred_check_branch
      %15 = sbr.rel (0) target = $region5
    $region4: #{mlp_forward.1} parent=1 // pred_region
      _
    $region5: #{mlp_forward.1} parent=1 // pred_fallthru
      _
    // Predicated region
    $region6: #{mlp_forward.1} parent=1 // pred_check
      _
    $region7: #{mlp_forward.1} parent=1 // pred_check_branch
      %17 = sbr.rel (0) target = $region9
    $region8: #{mlp_forward.1} parent=1 // pred_region
      %19 = vsyncadd [#allocation3], 0
      %s20 = sshll.u32 %s1, 4
      %s21 = int_to_ptr.hbm [resolvable:$true] %s20
      %s22 = sshll.u32 [#allocation2], 4
      %s23 = int_to_ptr.vmem [resolvable:$true] %s22
      %28 = dma.hbm_to_vmem [thread:$0]  %s21, 256, %s23, [#allocation3], 128, 128, 8
    $region9: #{mlp_forward.1} parent=1 // pred_fallthru
      _
    // Predicated region
    $region10: #{mlp_forward.1} parent=1 // pred_check
      _
    $region11: #{mlp_forward.1} parent=1 // pred_check_branch
      %30 = sbr.rel (0) target = $region13
    $region12: #{mlp_forward.1} parent=1 // pred_region
      _
    $region13: #{mlp_forward.1} parent=1 // pred_fallthru
      _
    // Predicated region
    $region14: #{mlp_forward.1} parent=1 // pred_check
      _
    $region15: #{mlp_forward.1} parent=1 // pred_check_branch
      %32 = sbr.rel (0) target = $region17
    $region16: #{mlp_forward.1} parent=1 // pred_region
      %34 = vsyncadd [#allocation5], 0
      %s35 = sshll.u32 %s3, 4
      %s36 = int_to_ptr.hbm [resolvable:$true] %s35
      %s37 = sshll.u32 [#allocation4], 4
      %s38 = int_to_ptr.vmem [resolvable:$true] %s37
      %43 = dma.hbm_to_vmem [thread:$0]  %s36, 2048, %s38, [#allocation5], 128, 128, 8
    $region17: #{mlp_forward.1} parent=1 // pred_fallthru
      _
    // Predicated region
    $region18: #{mlp_forward.1} parent=1 // pred_check
      _
    $region19: #{mlp_forward.1} parent=1 // pred_check_branch
      %45 = sbr.rel (0) target = $region21
    $region20: #{mlp_forward.1} parent=1 // pred_region
      _
    $region21: #{mlp_forward.1} parent=1 // pred_fallthru
      _
    // Predicated region
    $region22: #{mlp_forward.1} parent=1 // pred_check
      _
    $region23: #{mlp_forward.1} parent=1 // pred_check_branch
      %47 = sbr.rel (0) target = $region25
    $region24: #{mlp_forward.1} parent=1 // pred_region
      %49 = vsyncadd [#allocation5], 0
      %s50 = sshll.u32 %s5, 4
      %s51 = int_to_ptr.hbm [resolvable:$true] %s50
      %s52 = sshll.u32 [#allocation6], 4
      %s53 = int_to_ptr.vmem [resolvable:$true] %s52
      %58 = dma.hbm_to_vmem [thread:$0]  %s51, 2048, %s53, [#allocation5], 128, 128, 8
    $region25: #{mlp_forward.1} parent=1 // pred_fallthru
      _
    // Predicated region
    $region26: #{mlp_forward.1} parent=1 // pred_check
      _
    $region27: #{mlp_forward.1} parent=1 // pred_check_branch
      %60 = sbr.rel (0) target = $region29
    $region28: #{mlp_forward.1} parent=1 // pred_region
      _
    $region29: #{mlp_forward.1} parent=1 // pred_fallthru
      _
    // Predicated region
    $region30: #{mlp_forward.1} parent=1 // pred_check
      _
    $region31: #{mlp_forward.1} parent=1 // pred_check_branch
      %62 = sbr.rel (0) target = $region33
    $region32: #{mlp_forward.1} parent=1 // pred_region
      %64 = dma.done [#allocation3], 256
    $region33: #{mlp_forward.1} parent=1 // pred_fallthru
      _
    // Predicated region
    $region34: #{mlp_forward.1} parent=1 // pred_check
      _
    $region35: #{mlp_forward.1} parent=1 // pred_check_branch
      %66 = sbr.rel (0) target = $region37
    $region36: #{mlp_forward.1} parent=1 // pred_region
      %68 = dma.done [#allocation5], 2048
    $region37: #{mlp_forward.1} parent=1 // pred_fallthru
      _
    // Predicated region
    $region38: #{mlp_forward.1} parent=1 // pred_check
      _
    $region39: #{mlp_forward.1} parent=1 // pred_check_branch
      %70 = sbr.rel (0) target = $region41
    $region40: #{mlp_forward.1} parent=1 // pred_region
      %72 = dma.done [#allocation5], 2048
    $region41: #{mlp_forward.1} parent=1 // pred_fallthru
      _
    %v73 = vld [vmem:[%s0] sm:$0xff]
    %v74 = vld [vmem:[#allocation2] sm:$0xff]
    %v75 = vld [vmem:[#allocation2 + $0x8] sm:$0xff]
    %v76 = vld [vmem:[%s2] sm:$0x1]
    %v78 = vperm.slane %v76, 0
    %vm80 = vcmask 130048
    %v82 = vsel %vm80, %v73, 0
    %84 = vmatpush.msra.mxu0 0.0
    %85 = vmatpush.msra.mxu0 0.0
    %86 = vmatpush.msra.mxu0 0.0
    %87 = vmatpush.msra.mxu0 0.0
    %88 = vmatpush.msra.mxu0 0.0
    %89 = vmatpush.msra.mxu0 0.0
    %90 = vmatpush.msra.mxu0 0.0
    %91 = vmatpush.msra.mxu0 0.0
    %92 = vmatpush.msra.mxu0 0.0
    %93 = vmatpush.msra.mxu0 0.0
    %94 = vmatpush.msra.mxu0 0.0
    %95 = vmatpush.msra.mxu0 0.0
    %96 = vmatpush.msra.mxu0 0.0
    %97 = vmatpush.msra.mxu0 0.0
    %v98 = vand.u32 %v75, 4294901760
    %99 = vmatpush.msra.mxu0 %v98
    %v100 = vand.u32 %v74, 4294901760
    %101 = vmatpush.msra.mxu0 %v100
    %v102 = vand.u32 %v82, 4294901760
    %v103 = vsub.f32 %v82, %v102
    %v104 = vand.u32 %v103, 4294901760
    %v105 = vsub.f32 %v103, %v104
    %v106 = vand.u32 %v105, 4294901760
    %107 = vmatmul.f32.gmra.mxu0 %v106
    %v108 = vpop.f32.mrf.mxu0
    %v109 = vadd.f32 %v78, %v108
    %110 = vdwg.mxu0
    %111 = vmatpush.msra.mxu0 0.0
    %112 = vmatpush.msra.mxu0 0.0
    %113 = vmatpush.msra.mxu0 0.0
    %114 = vmatpush.msra.mxu0 0.0
    %115 = vmatpush.msra.mxu0 0.0
    %116 = vmatpush.msra.mxu0 0.0
    %117 = vmatpush.msra.mxu0 0.0
    %118 = vmatpush.msra.mxu0 0.0
    %119 = vmatpush.msra.mxu0 0.0
    %120 = vmatpush.msra.mxu0 0.0
    %121 = vmatpush.msra.mxu0 0.0
    %122 = vmatpush.msra.mxu0 0.0
    %123 = vmatpush.msra.mxu0 0.0
    %124 = vmatpush.msra.mxu0 0.0
    %v125 = vand.u32 %v75, 4294901760
    %v126 = vsub.f32 %v75, %v125
    %v127 = vand.u32 %v126, 4294901760
    %v128 = vsub.f32 %v126, %v127
    %v129 = vand.u32 %v128, 4294901760
    %130 = vmatpush.msra.mxu0 %v129
    %v131 = vand.u32 %v74, 4294901760
    %v132 = vsub.f32 %v74, %v131
    %v133 = vand.u32 %v132, 4294901760
    %v134 = vsub.f32 %v132, %v133
    %v135 = vand.u32 %v134, 4294901760
    %136 = vmatpush.msra.mxu0 %v135
    %v137 = vand.u32 %v82, 4294901760
    %138 = vmatmul.f32.gmra.mxu0 %v137
    %v139 = vpop.f32.mrf.mxu0
    %v140 = vadd.f32 %v109, %v139
    %141 = vdwg.mxu0
    %142 = vmatpush.msra.mxu0 0.0
    %143 = vmatpush.msra.mxu0 0.0
    %144 = vmatpush.msra.mxu0 0.0
    %145 = vmatpush.msra.mxu0 0.0
    %146 = vmatpush.msra.mxu0 0.0
    %147 = vmatpush.msra.mxu0 0.0
    %148 = vmatpush.msra.mxu0 0.0
    %149 = vmatpush.msra.mxu0 0.0
    %150 = vmatpush.msra.mxu0 0.0
    %151 = vmatpush.msra.mxu0 0.0
    %152 = vmatpush.msra.mxu0 0.0
    %153 = vmatpush.msra.mxu0 0.0
    %154 = vmatpush.msra.mxu0 0.0
    %155 = vmatpush.msra.mxu0 0.0
    %v156 = vand.u32 %v75, 4294901760
    %v157 = vsub.f32 %v75, %v156
    %158 = vmatpush.msra.mxu0 %v157
    %v159 = vand.u32 %v74, 4294901760
    %v160 = vsub.f32 %v74, %v159
    %161 = vmatpush.msra.mxu0 %v160
    %v162 = vand.u32 %v82, 4294901760
    %v163 = vsub.f32 %v82, %v162
    %164 = vmatmul.f32.gmra.mxu0 %v163
    %v165 = vpop.f32.mrf.mxu0
    %v166 = vadd.f32 %v140, %v165
    %167 = vdwg.mxu0
    %168 = vmatpush.msra.mxu0 0.0
    %169 = vmatpush.msra.mxu0 0.0
    %170 = vmatpush.msra.mxu0 0.0
    %171 = vmatpush.msra.mxu0 0.0
    %172 = vmatpush.msra.mxu0 0.0
    %173 = vmatpush.msra.mxu0 0.0
    %174 = vmatpush.msra.mxu0 0.0
    %175 = vmatpush.msra.mxu0 0.0
    %176 = vmatpush.msra.mxu0 0.0
    %177 = vmatpush.msra.mxu0 0.0
    %178 = vmatpush.msra.mxu0 0.0
    %179 = vmatpush.msra.mxu0 0.0
    %180 = vmatpush.msra.mxu0 0.0
    %181 = vmatpush.msra.mxu0 0.0
    %v182 = vand.u32 %v75, 4294901760
    %183 = vmatpush.msra.mxu0 %v182
    %v184 = vand.u32 %v74, 4294901760
    %185 = vmatpush.msra.mxu0 %v184
    %v186 = vand.u32 %v82, 4294901760
    %v187 = vsub.f32 %v82, %v186
    %v188 = vand.u32 %v187, 4294901760
    %189 = vmatmul.f32.gmra.mxu0 %v188
    %v190 = vpop.f32.mrf.mxu0
    %v191 = vadd.f32 %v166, %v190
    %192 = vdwg.mxu0
    %193 = vmatpush.msra.mxu0 0.0
    %194 = vmatpush.msra.mxu0 0.0
    %195 = vmatpush.msra.mxu0 0.0
    %196 = vmatpush.msra.mxu0 0.0
    %197 = vmatpush.msra.mxu0 0.0
    %198 = vmatpush.msra.mxu0 0.0
    %199 = vmatpush.msra.mxu0 0.0
    %200 = vmatpush.msra.mxu0 0.0
    %201 = vmatpush.msra.mxu0 0.0
    %202 = vmatpush.msra.mxu0 0.0
    %203 = vmatpush.msra.mxu0 0.0
    %204 = vmatpush.msra.mxu0 0.0
    %205 = vmatpush.msra.mxu0 0.0
    %206 = vmatpush.msra.mxu0 0.0
    %v207 = vand.u32 %v75, 4294901760
    %v208 = vsub.f32 %v75, %v207
    %v209 = vand.u32 %v208, 4294901760
    %210 = vmatpush.msra.mxu0 %v209
    %v211 = vand.u32 %v74, 4294901760
    %v212 = vsub.f32 %v74, %v211
    %v213 = vand.u32 %v212, 4294901760
    %214 = vmatpush.msra.mxu0 %v213
    %v215 = vand.u32 %v82, 4294901760
    %216 = vmatmul.f32.gmra.mxu0 %v215
    %v217 = vpop.f32.mrf.mxu0
    %v218 = vadd.f32 %v191, %v217
    %219 = vdwg.mxu0
    %220 = vmatpush.msra.mxu0 0.0
    %221 = vmatpush.msra.mxu0 0.0
    %222 = vmatpush.msra.mxu0 0.0
    %223 = vmatpush.msra.mxu0 0.0
    %224 = vmatpush.msra.mxu0 0.0
    %225 = vmatpush.msra.mxu0 0.0
    %226 = vmatpush.msra.mxu0 0.0
    %227 = vmatpush.msra.mxu0 0.0
    %228 = vmatpush.msra.mxu0 0.0
    %229 = vmatpush.msra.mxu0 0.0
    %230 = vmatpush.msra.mxu0 0.0
    %231 = vmatpush.msra.mxu0 0.0
    %232 = vmatpush.msra.mxu0 0.0
    %233 = vmatpush.msra.mxu0 0.0
    %v234 = vand.u32 %v75, 4294901760
    %235 = vmatpush.msra.mxu0 %v234
    %v236 = vand.u32 %v74, 4294901760
    %237 = vmatpush.msra.mxu0 %v236
    %v238 = vand.u32 %v82, 4294901760
    %239 = vmatmul.f32.gmra.mxu0 %v238
    %v240 = vpop.f32.mrf.mxu0
    %v241 = vadd.f32 %v218, %v240
    %242 = vdwg.mxu0
    %v243 = vmax.f32 %v241, 0.0
    %v244 = vld [vmem:[#allocation4] sm:$0xff]
    %v245 = vld [vmem:[#allocation4 + $0x8] sm:$0xff]
    %v246 = vld [vmem:[#allocation4 + $0x10] sm:$0xff]
    %v247 = vld [vmem:[#allocation4 + $0x18] sm:$0xff]
    %v248 = vld [vmem:[#allocation4 + $0x20] sm:$0xff]
    %v249 = vld [vmem:[#allocation4 + $0x28] sm:$0xff]
    %v250 = vld [vmem:[#allocation4 + $0x30] sm:$0xff]
    %v251 = vld [vmem:[#allocation4 + $0x38] sm:$0xff]
    %v252 = vld [vmem:[#allocation4 + $0x40] sm:$0xff]
    %v253 = vld [vmem:[#allocation4 + $0x48] sm:$0xff]
    %v254 = vld [vmem:[#allocation4 + $0x50] sm:$0xff]
    %v255 = vld [vmem:[#allocation4 + $0x58] sm:$0xff]
    %v256 = vld [vmem:[#allocation4 + $0x60] sm:$0xff]
    %v257 = vld [vmem:[#allocation4 + $0x68] sm:$0xff]
    %v258 = vld [vmem:[#allocation4 + $0x70] sm:$0xff]
    %v259 = vld [vmem:[#allocation4 + $0x78] sm:$0xff]
    %v260 = vld [vmem:[%s4] sm:$0x1]
    %v262 = vperm.slane %v260, 0
    %v264 = vand.u32 %v259, 4294901760
    %265 = vmatpush.msra.mxu0 %v264
    %v266 = vand.u32 %v258, 4294901760
    %267 = vmatpush.msra.mxu0 %v266
    %v268 = vand.u32 %v257, 4294901760
    %269 = vmatpush.msra.mxu0 %v268
    %v270 = vand.u32 %v256, 4294901760
    %271 = vmatpush.msra.mxu0 %v270
    %v272 = vand.u32 %v255, 4294901760
    %273 = vmatpush.msra.mxu0 %v272
    %v274 = vand.u32 %v254, 4294901760
    %275 = vmatpush.msra.mxu0 %v274
    %v276 = vand.u32 %v253, 4294901760
    %277 = vmatpush.msra.mxu0 %v276
    %v278 = vand.u32 %v252, 4294901760
    %279 = vmatpush.msra.mxu0 %v278
    %v280 = vand.u32 %v251, 4294901760
    %281 = vmatpush.msra.mxu0 %v280
    %v282 = vand.u32 %v250, 4294901760
    %283 = vmatpush.msra.mxu0 %v282
    %v284 = vand.u32 %v249, 4294901760
    %285 = vmatpush.msra.mxu0 %v284
    %v286 = vand.u32 %v248, 4294901760
    %287 = vmatpush.msra.mxu0 %v286
    %v288 = vand.u32 %v247, 4294901760
    %289 = vmatpush.msra.mxu0 %v288
    %v290 = vand.u32 %v246, 4294901760
    %291 = vmatpush.msra.mxu0 %v290
    %v292 = vand.u32 %v245, 4294901760
    %293 = vmatpush.msra.mxu0 %v292
    %v294 = vand.u32 %v244, 4294901760
    %295 = vmatpush.msra.mxu0 %v294
    %v296 = vand.u32 %v243, 4294901760
    %v297 = vsub.f32 %v243, %v296
    %v298 = vand.u32 %v297, 4294901760
    %v299 = vsub.f32 %v297, %v298
    %v300 = vand.u32 %v299, 4294901760
    %301 = vmatmul.f32.gmra.mxu0 %v300
    %v302 = vpop.f32.mrf.mxu0
    %v303 = vadd.f32 %v262, %v302
    %304 = vdwg.mxu0
    %v305 = vand.u32 %v259, 4294901760
    %v306 = vsub.f32 %v259, %v305
    %v307 = vand.u32 %v306, 4294901760
    %v308 = vsub.f32 %v306, %v307
    %v309 = vand.u32 %v308, 4294901760
    %310 = vmatpush.msra.mxu0 %v309
    %v311 = vand.u32 %v258, 4294901760
    %v312 = vsub.f32 %v258, %v311
    %v313 = vand.u32 %v312, 4294901760
    %v314 = vsub.f32 %v312, %v313
    %v315 = vand.u32 %v314, 4294901760
    %316 = vmatpush.msra.mxu0 %v315
    %v317 = vand.u32 %v257, 4294901760
    %v318 = vsub.f32 %v257, %v317
    %v319 = vand.u32 %v318, 4294901760
    %v320 = vsub.f32 %v318, %v319
    %v321 = vand.u32 %v320, 4294901760
    %322 = vmatpush.msra.mxu0 %v321
    %v323 = vand.u32 %v256, 4294901760
    %v324 = vsub.f32 %v256, %v323
    %v325 = vand.u32 %v324, 4294901760
    %v326 = vsub.f32 %v324, %v325
    %v327 = vand.u32 %v326, 4294901760
    %328 = vmatpush.msra.mxu0 %v327
    %v329 = vand.u32 %v255, 4294901760
    %v330 = vsub.f32 %v255, %v329
    %v331 = vand.u32 %v330, 4294901760
    %v332 = vsub.f32 %v330, %v331
    %v333 = vand.u32 %v332, 4294901760
    %334 = vmatpush.msra.mxu0 %v333
    %v335 = vand.u32 %v254, 4294901760
    %v336 = vsub.f32 %v254, %v335
    %v337 = vand.u32 %v336, 4294901760
    %v338 = vsub.f32 %v336, %v337
    %v339 = vand.u32 %v338, 4294901760
    %340 = vmatpush.msra.mxu0 %v339
    %v341 = vand.u32 %v253, 4294901760
    %v342 = vsub.f32 %v253, %v341
    %v343 = vand.u32 %v342, 4294901760
    %v344 = vsub.f32 %v342, %v343
    %v345 = vand.u32 %v344, 4294901760
    %346 = vmatpush.msra.mxu0 %v345
    %v347 = vand.u32 %v252, 4294901760
    %v348 = vsub.f32 %v252, %v347
    %v349 = vand.u32 %v348, 4294901760
    %v350 = vsub.f32 %v348, %v349
    %v351 = vand.u32 %v350, 4294901760
    %352 = vmatpush.msra.mxu0 %v351
    %v353 = vand.u32 %v251, 4294901760
    %v354 = vsub.f32 %v251, %v353
    %v355 = vand.u32 %v354, 4294901760
    %v356 = vsub.f32 %v354, %v355
    %v357 = vand.u32 %v356, 4294901760
    %358 = vmatpush.msra.mxu0 %v357
    %v359 = vand.u32 %v250, 4294901760
    %v360 = vsub.f32 %v250, %v359
    %v361 = vand.u32 %v360, 4294901760
    %v362 = vsub.f32 %v360, %v361
    %v363 = vand.u32 %v362, 4294901760
    %364 = vmatpush.msra.mxu0 %v363
    %v365 = vand.u32 %v249, 4294901760
    %v366 = vsub.f32 %v249, %v365
    %v367 = vand.u32 %v366, 4294901760
    %v368 = vsub.f32 %v366, %v367
    %v369 = vand.u32 %v368, 4294901760
    %370 = vmatpush.msra.mxu0 %v369
    %v371 = vand.u32 %v248, 4294901760
    %v372 = vsub.f32 %v248, %v371
    %v373 = vand.u32 %v372, 4294901760
    %v374 = vsub.f32 %v372, %v373
    %v375 = vand.u32 %v374, 4294901760
    %376 = vmatpush.msra.mxu0 %v375
    %v377 = vand.u32 %v247, 4294901760
    %v378 = vsub.f32 %v247, %v377
    %v379 = vand.u32 %v378, 4294901760
    %v380 = vsub.f32 %v378, %v379
    %v381 = vand.u32 %v380, 4294901760
    %382 = vmatpush.msra.mxu0 %v381
    %v383 = vand.u32 %v246, 4294901760
    %v384 = vsub.f32 %v246, %v383
    %v385 = vand.u32 %v384, 4294901760
    %v386 = vsub.f32 %v384, %v385
    %v387 = vand.u32 %v386, 4294901760
    %388 = vmatpush.msra.mxu0 %v387
    %v389 = vand.u32 %v245, 4294901760
    %v390 = vsub.f32 %v245, %v389
    %v391 = vand.u32 %v390, 4294901760
    %v392 = vsub.f32 %v390, %v391
    %v393 = vand.u32 %v392, 4294901760
    %394 = vmatpush.msra.mxu0 %v393
    %v395 = vand.u32 %v244, 4294901760
    %v396 = vsub.f32 %v244, %v395
    %v397 = vand.u32 %v396, 4294901760
    %v398 = vsub.f32 %v396, %v397
    %v399 = vand.u32 %v398, 4294901760
    %400 = vmatpush.msra.mxu0 %v399
    %v401 = vand.u32 %v243, 4294901760
    %402 = vmatmul.f32.gmra.mxu0 %v401
    %v403 = vpop.f32.mrf.mxu0
    %v404 = vadd.f32 %v303, %v403
    %405 = vdwg.mxu0
    %v406 = vand.u32 %v259, 4294901760
    %v407 = vsub.f32 %v259, %v406
    %408 = vmatpush.msra.mxu0 %v407
    %v409 = vand.u32 %v258, 4294901760
    %v410 = vsub.f32 %v258, %v409
    %411 = vmatpush.msra.mxu0 %v410
    %v412 = vand.u32 %v257, 4294901760
    %v413 = vsub.f32 %v257, %v412
    %414 = vmatpush.msra.mxu0 %v413
    %v415 = vand.u32 %v256, 4294901760
    %v416 = vsub.f32 %v256, %v415
    %417 = vmatpush.msra.mxu0 %v416
    %v418 = vand.u32 %v255, 4294901760
    %v419 = vsub.f32 %v255, %v418
    %420 = vmatpush.msra.mxu0 %v419
    %v421 = vand.u32 %v254, 4294901760
    %v422 = vsub.f32 %v254, %v421
    %423 = vmatpush.msra.mxu0 %v422
    %v424 = vand.u32 %v253, 4294901760
    %v425 = vsub.f32 %v253, %v424
    %426 = vmatpush.msra.mxu0 %v425
    %v427 = vand.u32 %v252, 4294901760
    %v428 = vsub.f32 %v252, %v427
    %429 = vmatpush.msra.mxu0 %v428
    %v430 = vand.u32 %v251, 4294901760
    %v431 = vsub.f32 %v251, %v430
    %432 = vmatpush.msra.mxu0 %v431
    %v433 = vand.u32 %v250, 4294901760
    %v434 = vsub.f32 %v250, %v433
    %435 = vmatpush.msra.mxu0 %v434
    %v436 = vand.u32 %v249, 4294901760
    %v437 = vsub.f32 %v249, %v436
    %438 = vmatpush.msra.mxu0 %v437
    %v439 = vand.u32 %v248, 4294901760
    %v440 = vsub.f32 %v248, %v439
    %441 = vmatpush.msra.mxu0 %v440
    %v442 = vand.u32 %v247, 4294901760
    %v443 = vsub.f32 %v247, %v442
    %444 = vmatpush.msra.mxu0 %v443
    %v445 = vand.u32 %v246, 4294901760
    %v446 = vsub.f32 %v246, %v445
    %447 = vmatpush.msra.mxu0 %v446
    %v448 = vand.u32 %v245, 4294901760
    %v449 = vsub.f32 %v245, %v448
    %450 = vmatpush.msra.mxu0 %v449
    %v451 = vand.u32 %v244, 4294901760
    %v452 = vsub.f32 %v244, %v451
    %453 = vmatpush.msra.mxu0 %v452
    %v454 = vand.u32 %v243, 4294901760
    %v455 = vsub.f32 %v243, %v454
    %456 = vmatmul.f32.gmra.mxu0 %v455
    %v457 = vpop.f32.mrf.mxu0
    %v458 = vadd.f32 %v404, %v457
    %459 = vdwg.mxu0
    %v460 = vand.u32 %v259, 4294901760
    %461 = vmatpush.msra.mxu0 %v460
    %v462 = vand.u32 %v258, 4294901760
    %463 = vmatpush.msra.mxu0 %v462
    %v464 = vand.u32 %v257, 4294901760
    %465 = vmatpush.msra.mxu0 %v464
    %v466 = vand.u32 %v256, 4294901760
    %467 = vmatpush.msra.mxu0 %v466
    %v468 = vand.u32 %v255, 4294901760
    %469 = vmatpush.msra.mxu0 %v468
    %v470 = vand.u32 %v254, 4294901760
    %471 = vmatpush.msra.mxu0 %v470
    %v472 = vand.u32 %v253, 4294901760
    %473 = vmatpush.msra.mxu0 %v472
    %v474 = vand.u32 %v252, 4294901760
    %475 = vmatpush.msra.mxu0 %v474
    %v476 = vand.u32 %v251, 4294901760
    %477 = vmatpush.msra.mxu0 %v476
    %v478 = vand.u32 %v250, 4294901760
    %479 = vmatpush.msra.mxu0 %v478
    %v480 = vand.u32 %v249, 4294901760
    %481 = vmatpush.msra.mxu0 %v480
    %v482 = vand.u32 %v248, 4294901760
    %483 = vmatpush.msra.mxu0 %v482
    %v484 = vand.u32 %v247, 4294901760
    %485 = vmatpush.msra.mxu0 %v484
    %v486 = vand.u32 %v246, 4294901760
    %487 = vmatpush.msra.mxu0 %v486
    %v488 = vand.u32 %v245, 4294901760
    %489 = vmatpush.msra.mxu0 %v488
    %v490 = vand.u32 %v244, 4294901760
    %491 = vmatpush.msra.mxu0 %v490
    %v492 = vand.u32 %v243, 4294901760
    %v493 = vsub.f32 %v243, %v492
    %v494 = vand.u32 %v493, 4294901760
    %495 = vmatmul.f32.gmra.mxu0 %v494
    %v496 = vpop.f32.mrf.mxu0
    %v497 = vadd.f32 %v458, %v496
    %498 = vdwg.mxu0
    %v499 = vand.u32 %v259, 4294901760
    %v500 = vsub.f32 %v259, %v499
    %v501 = vand.u32 %v500, 4294901760
    %502 = vmatpush.msra.mxu0 %v501
    %v503 = vand.u32 %v258, 4294901760
    %v504 = vsub.f32 %v258, %v503
    %v505 = vand.u32 %v504, 4294901760
    %506 = vmatpush.msra.mxu0 %v505
    %v507 = vand.u32 %v257, 4294901760
    %v508 = vsub.f32 %v257, %v507
    %v509 = vand.u32 %v508, 4294901760
    %510 = vmatpush.msra.mxu0 %v509
    %v511 = vand.u32 %v256, 4294901760
    %v512 = vsub.f32 %v256, %v511
    %v513 = vand.u32 %v512, 4294901760
    %514 = vmatpush.msra.mxu0 %v513
    %v515 = vand.u32 %v255, 4294901760
    %v516 = vsub.f32 %v255, %v515
    %v517 = vand.u32 %v516, 4294901760
    %518 = vmatpush.msra.mxu0 %v517
    %v519 = vand.u32 %v254, 4294901760
    %v520 = vsub.f32 %v254, %v519
    %v521 = vand.u32 %v520, 4294901760
    %522 = vmatpush.msra.mxu0 %v521
    %v523 = vand.u32 %v253, 4294901760
    %v524 = vsub.f32 %v253, %v523
    %v525 = vand.u32 %v524, 4294901760
    %526 = vmatpush.msra.mxu0 %v525
    %v527 = vand.u32 %v252, 4294901760
    %v528 = vsub.f32 %v252, %v527
    %v529 = vand.u32 %v528, 4294901760
    %530 = vmatpush.msra.mxu0 %v529
    %v531 = vand.u32 %v251, 4294901760
    %v532 = vsub.f32 %v251, %v531
    %v533 = vand.u32 %v532, 4294901760
    %534 = vmatpush.msra.mxu0 %v533
    %v535 = vand.u32 %v250, 4294901760
    %v536 = vsub.f32 %v250, %v535
    %v537 = vand.u32 %v536, 4294901760
    %538 = vmatpush.msra.mxu0 %v537
    %v539 = vand.u32 %v249, 4294901760
    %v540 = vsub.f32 %v249, %v539
    %v541 = vand.u32 %v540, 4294901760
    %542 = vmatpush.msra.mxu0 %v541
    %v543 = vand.u32 %v248, 4294901760
    %v544 = vsub.f32 %v248, %v543
    %v545 = vand.u32 %v544, 4294901760
    %546 = vmatpush.msra.mxu0 %v545
    %v547 = vand.u32 %v247, 4294901760
    %v548 = vsub.f32 %v247, %v547
    %v549 = vand.u32 %v548, 4294901760
    %550 = vmatpush.msra.mxu0 %v549
    %v551 = vand.u32 %v246, 4294901760
    %v552 = vsub.f32 %v246, %v551
    %v553 = vand.u32 %v552, 4294901760
    %554 = vmatpush.msra.mxu0 %v553
    %v555 = vand.u32 %v245, 4294901760
    %v556 = vsub.f32 %v245, %v555
    %v557 = vand.u32 %v556, 4294901760
    %558 = vmatpush.msra.mxu0 %v557
    %v559 = vand.u32 %v244, 4294901760
    %v560 = vsub.f32 %v244, %v559
    %v561 = vand.u32 %v560, 4294901760
    %562 = vmatpush.msra.mxu0 %v561
    %v563 = vand.u32 %v243, 4294901760
    %564 = vmatmul.f32.gmra.mxu0 %v563
    %v565 = vpop.f32.mrf.mxu0
    %v566 = vadd.f32 %v497, %v565
    %567 = vdwg.mxu0
    %v568 = vand.u32 %v259, 4294901760
    %569 = vmatpush.msra.mxu0 %v568
    %v570 = vand.u32 %v258, 4294901760
    %571 = vmatpush.msra.mxu0 %v570
    %v572 = vand.u32 %v257, 4294901760
    %573 = vmatpush.msra.mxu0 %v572
    %v574 = vand.u32 %v256, 4294901760
    %575 = vmatpush.msra.mxu0 %v574
    %v576 = vand.u32 %v255, 4294901760
    %577 = vmatpush.msra.mxu0 %v576
    %v578 = vand.u32 %v254, 4294901760
    %579 = vmatpush.msra.mxu0 %v578
    %v580 = vand.u32 %v253, 4294901760
    %581 = vmatpush.msra.mxu0 %v580
    %v582 = vand.u32 %v252, 4294901760
    %583 = vmatpush.msra.mxu0 %v582
    %v584 = vand.u32 %v251, 4294901760
    %585 = vmatpush.msra.mxu0 %v584
    %v586 = vand.u32 %v250, 4294901760
    %587 = vmatpush.msra.mxu0 %v586
    %v588 = vand.u32 %v249, 4294901760
    %589 = vmatpush.msra.mxu0 %v588
    %v590 = vand.u32 %v248, 4294901760
    %591 = vmatpush.msra.mxu0 %v590
    %v592 = vand.u32 %v247, 4294901760
    %593 = vmatpush.msra.mxu0 %v592
    %v594 = vand.u32 %v246, 4294901760
    %595 = vmatpush.msra.mxu0 %v594
    %v596 = vand.u32 %v245, 4294901760
    %597 = vmatpush.msra.mxu0 %v596
    %v598 = vand.u32 %v244, 4294901760
    %599 = vmatpush.msra.mxu0 %v598
    %v600 = vand.u32 %v243, 4294901760
    %601 = vmatmul.f32.gmra.mxu0 %v600
    %v602 = vpop.f32.mrf.mxu0
    %v603 = vadd.f32 %v566, %v602
    %604 = vdwg.mxu0
    %v605 = vmax.f32 %v603, 0.0
    %v606 = vld [vmem:[#allocation6] sm:$0xff]
    %v607 = vld [vmem:[#allocation6 + $0x8] sm:$0xff]
    %v608 = vld [vmem:[#allocation6 + $0x10] sm:$0xff]
    %v609 = vld [vmem:[#allocation6 + $0x18] sm:$0xff]
    %v610 = vld [vmem:[#allocation6 + $0x20] sm:$0xff]
    %v611 = vld [vmem:[#allocation6 + $0x28] sm:$0xff]
    %v612 = vld [vmem:[#allocation6 + $0x30] sm:$0xff]
    %v613 = vld [vmem:[#allocation6 + $0x38] sm:$0xff]
    %v614 = vld [vmem:[#allocation6 + $0x40] sm:$0xff]
    %v615 = vld [vmem:[#allocation6 + $0x48] sm:$0xff]
    %v616 = vld [vmem:[#allocation6 + $0x50] sm:$0xff]
    %v617 = vld [vmem:[#allocation6 + $0x58] sm:$0xff]
    %v618 = vld [vmem:[#allocation6 + $0x60] sm:$0xff]
    %v619 = vld [vmem:[#allocation6 + $0x68] sm:$0xff]
    %v620 = vld [vmem:[#allocation6 + $0x70] sm:$0xff]
    %v621 = vld [vmem:[#allocation6 + $0x78] sm:$0xff]
    %v622 = vld [vmem:[%s6] sm:$0x1]
    %v624 = vperm.slane %v622, 0
    %v626 = vand.u32 %v621, 4294901760
    %627 = vmatpush.msra.mxu0 %v626
    %v628 = vand.u32 %v620, 4294901760
    %629 = vmatpush.msra.mxu0 %v628
    %v630 = vand.u32 %v619, 4294901760
    %631 = vmatpush.msra.mxu0 %v630
    %v632 = vand.u32 %v618, 4294901760
    %633 = vmatpush.msra.mxu0 %v632
    %v634 = vand.u32 %v617, 4294901760
    %635 = vmatpush.msra.mxu0 %v634
    %v636 = vand.u32 %v616, 4294901760
    %637 = vmatpush.msra.mxu0 %v636
    %v638 = vand.u32 %v615, 4294901760
    %639 = vmatpush.msra.mxu0 %v638
    %v640 = vand.u32 %v614, 4294901760
    %641 = vmatpush.msra.mxu0 %v640
    %v642 = vand.u32 %v613, 4294901760
    %643 = vmatpush.msra.mxu0 %v642
    %v644 = vand.u32 %v612, 4294901760
    %645 = vmatpush.msra.mxu0 %v644
    %v646 = vand.u32 %v611, 4294901760
    %647 = vmatpush.msra.mxu0 %v646
    %v648 = vand.u32 %v610, 4294901760
    %649 = vmatpush.msra.mxu0 %v648
    %v650 = vand.u32 %v609, 4294901760
    %651 = vmatpush.msra.mxu0 %v650
    %v652 = vand.u32 %v608, 4294901760
    %653 = vmatpush.msra.mxu0 %v652
    %v654 = vand.u32 %v607, 4294901760
    %655 = vmatpush.msra.mxu0 %v654
    %v656 = vand.u32 %v606, 4294901760
    %657 = vmatpush.msra.mxu0 %v656
    %v658 = vand.u32 %v605, 4294901760
    %v659 = vsub.f32 %v605, %v658
    %v660 = vand.u32 %v659, 4294901760
    %v661 = vsub.f32 %v659, %v660
    %v662 = vand.u32 %v661, 4294901760
    %663 = vmatmul.f32.gmra.mxu0 %v662
    %v664 = vpop.f32.mrf.mxu0
    %v665 = vadd.f32 %v624, %v664
    %666 = vdwg.mxu0
    %v667 = vand.u32 %v621, 4294901760
    %v668 = vsub.f32 %v621, %v667
    %v669 = vand.u32 %v668, 4294901760
    %v670 = vsub.f32 %v668, %v669
    %v671 = vand.u32 %v670, 4294901760
    %672 = vmatpush.msra.mxu0 %v671
    %v673 = vand.u32 %v620, 4294901760
    %v674 = vsub.f32 %v620, %v673
    %v675 = vand.u32 %v674, 4294901760
    %v676 = vsub.f32 %v674, %v675
    %v677 = vand.u32 %v676, 4294901760
    %678 = vmatpush.msra.mxu0 %v677
    %v679 = vand.u32 %v619, 4294901760
    %v680 = vsub.f32 %v619, %v679
    %v681 = vand.u32 %v680, 4294901760
    %v682 = vsub.f32 %v680, %v681
    %v683 = vand.u32 %v682, 4294901760
    %684 = vmatpush.msra.mxu0 %v683
    %v685 = vand.u32 %v618, 4294901760
    %v686 = vsub.f32 %v618, %v685
    %v687 = vand.u32 %v686, 4294901760
    %v688 = vsub.f32 %v686, %v687
    %v689 = vand.u32 %v688, 4294901760
    %690 = vmatpush.msra.mxu0 %v689
    %v691 = vand.u32 %v617, 4294901760
    %v692 = vsub.f32 %v617, %v691
    %v693 = vand.u32 %v692, 4294901760
    %v694 = vsub.f32 %v692, %v693
    %v695 = vand.u32 %v694, 4294901760
    %696 = vmatpush.msra.mxu0 %v695
    %v697 = vand.u32 %v616, 4294901760
    %v698 = vsub.f32 %v616, %v697
    %v699 = vand.u32 %v698, 4294901760
    %v700 = vsub.f32 %v698, %v699
    %v701 = vand.u32 %v700, 4294901760
    %702 = vmatpush.msra.mxu0 %v701
    %v703 = vand.u32 %v615, 4294901760
    %v704 = vsub.f32 %v615, %v703
    %v705 = vand.u32 %v704, 4294901760
    %v706 = vsub.f32 %v704, %v705
    %v707 = vand.u32 %v706, 4294901760
    %708 = vmatpush.msra.mxu0 %v707
    %v709 = vand.u32 %v614, 4294901760
    %v710 = vsub.f32 %v614, %v709
    %v711 = vand.u32 %v710, 4294901760
    %v712 = vsub.f32 %v710, %v711
    %v713 = vand.u32 %v712, 4294901760
    %714 = vmatpush.msra.mxu0 %v713
    %v715 = vand.u32 %v613, 4294901760
    %v716 = vsub.f32 %v613, %v715
    %v717 = vand.u32 %v716, 4294901760
    %v718 = vsub.f32 %v716, %v717
    %v719 = vand.u32 %v718, 4294901760
    %720 = vmatpush.msra.mxu0 %v719
    %v721 = vand.u32 %v612, 4294901760
    %v722 = vsub.f32 %v612, %v721
    %v723 = vand.u32 %v722, 4294901760
    %v724 = vsub.f32 %v722, %v723
    %v725 = vand.u32 %v724, 4294901760
    %726 = vmatpush.msra.mxu0 %v725
    %v727 = vand.u32 %v611, 4294901760
    %v728 = vsub.f32 %v611, %v727
    %v729 = vand.u32 %v728, 4294901760
    %v730 = vsub.f32 %v728, %v729
    %v731 = vand.u32 %v730, 4294901760
    %732 = vmatpush.msra.mxu0 %v731
    %v733 = vand.u32 %v610, 4294901760
    %v734 = vsub.f32 %v610, %v733
    %v735 = vand.u32 %v734, 4294901760
    %v736 = vsub.f32 %v734, %v735
    %v737 = vand.u32 %v736, 4294901760
    %738 = vmatpush.msra.mxu0 %v737
    %v739 = vand.u32 %v609, 4294901760
    %v740 = vsub.f32 %v609, %v739
    %v741 = vand.u32 %v740, 4294901760
    %v742 = vsub.f32 %v740, %v741
    %v743 = vand.u32 %v742, 4294901760
    %744 = vmatpush.msra.mxu0 %v743
    %v745 = vand.u32 %v608, 4294901760
    %v746 = vsub.f32 %v608, %v745
    %v747 = vand.u32 %v746, 4294901760
    %v748 = vsub.f32 %v746, %v747
    %v749 = vand.u32 %v748, 4294901760
    %750 = vmatpush.msra.mxu0 %v749
    %v751 = vand.u32 %v607, 4294901760
    %v752 = vsub.f32 %v607, %v751
    %v753 = vand.u32 %v752, 4294901760
    %v754 = vsub.f32 %v752, %v753
    %v755 = vand.u32 %v754, 4294901760
    %756 = vmatpush.msra.mxu0 %v755
    %v757 = vand.u32 %v606, 4294901760
    %v758 = vsub.f32 %v606, %v757
    %v759 = vand.u32 %v758, 4294901760
    %v760 = vsub.f32 %v758, %v759
    %v761 = vand.u32 %v760, 4294901760
    %762 = vmatpush.msra.mxu0 %v761
    %v763 = vand.u32 %v605, 4294901760
    %764 = vmatmul.f32.gmra.mxu0 %v763
    %v765 = vpop.f32.mrf.mxu0
    %v766 = vadd.f32 %v665, %v765
    %767 = vdwg.mxu0
    %v768 = vand.u32 %v621, 4294901760
    %v769 = vsub.f32 %v621, %v768
    %770 = vmatpush.msra.mxu0 %v769
    %v771 = vand.u32 %v620, 4294901760
    %v772 = vsub.f32 %v620, %v771
    %773 = vmatpush.msra.mxu0 %v772
    %v774 = vand.u32 %v619, 4294901760
    %v775 = vsub.f32 %v619, %v774
    %776 = vmatpush.msra.mxu0 %v775
    %v777 = vand.u32 %v618, 4294901760
    %v778 = vsub.f32 %v618, %v777
    %779 = vmatpush.msra.mxu0 %v778
    %v780 = vand.u32 %v617, 4294901760
    %v781 = vsub.f32 %v617, %v780
    %782 = vmatpush.msra.mxu0 %v781
    %v783 = vand.u32 %v616, 4294901760
    %v784 = vsub.f32 %v616, %v783
    %785 = vmatpush.msra.mxu0 %v784
    %v786 = vand.u32 %v615, 4294901760
    %v787 = vsub.f32 %v615, %v786
    %788 = vmatpush.msra.mxu0 %v787
    %v789 = vand.u32 %v614, 4294901760
    %v790 = vsub.f32 %v614, %v789
    %791 = vmatpush.msra.mxu0 %v790
    %v792 = vand.u32 %v613, 4294901760
    %v793 = vsub.f32 %v613, %v792
    %794 = vmatpush.msra.mxu0 %v793
    %v795 = vand.u32 %v612, 4294901760
    %v796 = vsub.f32 %v612, %v795
    %797 = vmatpush.msra.mxu0 %v796
    %v798 = vand.u32 %v611, 4294901760
    %v799 = vsub.f32 %v611, %v798
    %800 = vmatpush.msra.mxu0 %v799
    %v801 = vand.u32 %v610, 4294901760
    %v802 = vsub.f32 %v610, %v801
    %803 = vmatpush.msra.mxu0 %v802
    %v804 = vand.u32 %v609, 4294901760
    %v805 = vsub.f32 %v609, %v804
    %806 = vmatpush.msra.mxu0 %v805
    %v807 = vand.u32 %v608, 4294901760
    %v808 = vsub.f32 %v608, %v807
    %809 = vmatpush.msra.mxu0 %v808
    %v810 = vand.u32 %v607, 4294901760
    %v811 = vsub.f32 %v607, %v810
    %812 = vmatpush.msra.mxu0 %v811
    %v813 = vand.u32 %v606, 4294901760
    %v814 = vsub.f32 %v606, %v813
    %815 = vmatpush.msra.mxu0 %v814
    %v816 = vand.u32 %v605, 4294901760
    %v817 = vsub.f32 %v605, %v816
    %818 = vmatmul.f32.gmra.mxu0 %v817
    %v819 = vpop.f32.mrf.mxu0
    %v820 = vadd.f32 %v766, %v819
    %821 = vdwg.mxu0
    %v822 = vand.u32 %v621, 4294901760
    %823 = vmatpush.msra.mxu0 %v822
    %v824 = vand.u32 %v620, 4294901760
    %825 = vmatpush.msra.mxu0 %v824
    %v826 = vand.u32 %v619, 4294901760
    %827 = vmatpush.msra.mxu0 %v826
    %v828 = vand.u32 %v618, 4294901760
    %829 = vmatpush.msra.mxu0 %v828
    %v830 = vand.u32 %v617, 4294901760
    %831 = vmatpush.msra.mxu0 %v830
    %v832 = vand.u32 %v616, 4294901760
    %833 = vmatpush.msra.mxu0 %v832
    %v834 = vand.u32 %v615, 4294901760
    %835 = vmatpush.msra.mxu0 %v834
    %v836 = vand.u32 %v614, 4294901760
    %837 = vmatpush.msra.mxu0 %v836
    %v838 = vand.u32 %v613, 4294901760
    %839 = vmatpush.msra.mxu0 %v838
    %v840 = vand.u32 %v612, 4294901760
    %841 = vmatpush.msra.mxu0 %v840
    %v842 = vand.u32 %v611, 4294901760
    %843 = vmatpush.msra.mxu0 %v842
    %v844 = vand.u32 %v610, 4294901760
    %845 = vmatpush.msra.mxu0 %v844
    %v846 = vand.u32 %v609, 4294901760
    %847 = vmatpush.msra.mxu0 %v846
    %v848 = vand.u32 %v608, 4294901760
    %849 = vmatpush.msra.mxu0 %v848
    %v850 = vand.u32 %v607, 4294901760
    %851 = vmatpush.msra.mxu0 %v850
    %v852 = vand.u32 %v606, 4294901760
    %853 = vmatpush.msra.mxu0 %v852
    %v854 = vand.u32 %v605, 4294901760
    %v855 = vsub.f32 %v605, %v854
    %v856 = vand.u32 %v855, 4294901760
    %857 = vmatmul.f32.gmra.mxu0 %v856
    %v858 = vpop.f32.mrf.mxu0
    %v859 = vadd.f32 %v820, %v858
    %860 = vdwg.mxu0
    %v861 = vand.u32 %v621, 4294901760
    %v862 = vsub.f32 %v621, %v861
    %v863 = vand.u32 %v862, 4294901760
    %864 = vmatpush.msra.mxu0 %v863
    %v865 = vand.u32 %v620, 4294901760
    %v866 = vsub.f32 %v620, %v865
    %v867 = vand.u32 %v866, 4294901760
    %868 = vmatpush.msra.mxu0 %v867
    %v869 = vand.u32 %v619, 4294901760
    %v870 = vsub.f32 %v619, %v869
    %v871 = vand.u32 %v870, 4294901760
    %872 = vmatpush.msra.mxu0 %v871
    %v873 = vand.u32 %v618, 4294901760
    %v874 = vsub.f32 %v618, %v873
    %v875 = vand.u32 %v874, 4294901760
    %876 = vmatpush.msra.mxu0 %v875
    %v877 = vand.u32 %v617, 4294901760
    %v878 = vsub.f32 %v617, %v877
    %v879 = vand.u32 %v878, 4294901760
    %880 = vmatpush.msra.mxu0 %v879
    %v881 = vand.u32 %v616, 4294901760
    %v882 = vsub.f32 %v616, %v881
    %v883 = vand.u32 %v882, 4294901760
    %884 = vmatpush.msra.mxu0 %v883
    %v885 = vand.u32 %v615, 4294901760
    %v886 = vsub.f32 %v615, %v885
    %v887 = vand.u32 %v886, 4294901760
    %888 = vmatpush.msra.mxu0 %v887
    %v889 = vand.u32 %v614, 4294901760
    %v890 = vsub.f32 %v614, %v889
    %v891 = vand.u32 %v890, 4294901760
    %892 = vmatpush.msra.mxu0 %v891
    %v893 = vand.u32 %v613, 4294901760
    %v894 = vsub.f32 %v613, %v893
    %v895 = vand.u32 %v894, 4294901760
    %896 = vmatpush.msra.mxu0 %v895
    %v897 = vand.u32 %v612, 4294901760
    %v898 = vsub.f32 %v612, %v897
    %v899 = vand.u32 %v898, 4294901760
    %900 = vmatpush.msra.mxu0 %v899
    %v901 = vand.u32 %v611, 4294901760
    %v902 = vsub.f32 %v611, %v901
    %v903 = vand.u32 %v902, 4294901760
    %904 = vmatpush.msra.mxu0 %v903
    %v905 = vand.u32 %v610, 4294901760
    %v906 = vsub.f32 %v610, %v905
    %v907 = vand.u32 %v906, 4294901760
    %908 = vmatpush.msra.mxu0 %v907
    %v909 = vand.u32 %v609, 4294901760
    %v910 = vsub.f32 %v609, %v909
    %v911 = vand.u32 %v910, 4294901760
    %912 = vmatpush.msra.mxu0 %v911
    %v913 = vand.u32 %v608, 4294901760
    %v914 = vsub.f32 %v608, %v913
    %v915 = vand.u32 %v914, 4294901760
    %916 = vmatpush.msra.mxu0 %v915
    %v917 = vand.u32 %v607, 4294901760
    %v918 = vsub.f32 %v607, %v917
    %v919 = vand.u32 %v918, 4294901760
    %920 = vmatpush.msra.mxu0 %v919
    %v921 = vand.u32 %v606, 4294901760
    %v922 = vsub.f32 %v606, %v921
    %v923 = vand.u32 %v922, 4294901760
    %924 = vmatpush.msra.mxu0 %v923
    %v925 = vand.u32 %v605, 4294901760
    %926 = vmatmul.f32.gmra.mxu0 %v925
    %v927 = vpop.f32.mrf.mxu0
    %v928 = vadd.f32 %v859, %v927
    %929 = vdwg.mxu0
    %v930 = vand.u32 %v621, 4294901760
    %931 = vmatpush.msra.mxu0 %v930
    %v932 = vand.u32 %v620, 4294901760
    %933 = vmatpush.msra.mxu0 %v932
    %v934 = vand.u32 %v619, 4294901760
    %935 = vmatpush.msra.mxu0 %v934
    %v936 = vand.u32 %v618, 4294901760
    %937 = vmatpush.msra.mxu0 %v936
    %v938 = vand.u32 %v617, 4294901760
    %939 = vmatpush.msra.mxu0 %v938
    %v940 = vand.u32 %v616, 4294901760
    %941 = vmatpush.msra.mxu0 %v940
    %v942 = vand.u32 %v615, 4294901760
    %943 = vmatpush.msra.mxu0 %v942
    %v944 = vand.u32 %v614, 4294901760
    %945 = vmatpush.msra.mxu0 %v944
    %v946 = vand.u32 %v613, 4294901760
    %947 = vmatpush.msra.mxu0 %v946
    %v948 = vand.u32 %v612, 4294901760
    %949 = vmatpush.msra.mxu0 %v948
    %v950 = vand.u32 %v611, 4294901760
    %951 = vmatpush.msra.mxu0 %v950
    %v952 = vand.u32 %v610, 4294901760
    %953 = vmatpush.msra.mxu0 %v952
    %v954 = vand.u32 %v609, 4294901760
    %955 = vmatpush.msra.mxu0 %v954
    %v956 = vand.u32 %v608, 4294901760
    %957 = vmatpush.msra.mxu0 %v956
    %v958 = vand.u32 %v607, 4294901760
    %959 = vmatpush.msra.mxu0 %v958
    %v960 = vand.u32 %v606, 4294901760
    %961 = vmatpush.msra.mxu0 %v960
    %v962 = vand.u32 %v605, 4294901760
    %963 = vmatmul.f32.gmra.mxu0 %v962
    %v964 = vpop.f32.mrf.mxu0
    %v965 = vadd.f32 %v928, %v964
    %966 = vdwg.mxu0
    %967 = vst [vmem:[%s7] sm:$0xff] %v965
    // Predicated region
    $region42: #{mlp_forward.1} parent=1 // pred_check
      _
    $region43: #{mlp_forward.1} parent=1 // pred_check_branch
      %969 = sbr.rel (0) target = $region45
    $region44: #{mlp_forward.1} parent=1 // pred_region
      _
    $region45: #{mlp_forward.1} parent=1 // pred_fallthru
      _
    // Predicated region
    $region46: #{mlp_forward.1} parent=1 // pred_check
      _
    $region47: #{mlp_forward.1} parent=1 // pred_check_branch
      %971 = sbr.rel (0) target = $region49
    $region48: #{mlp_forward.1} parent=1 // pred_region
      _
    $region49: #{mlp_forward.1} parent=1 // pred_fallthru
      _
    %972 = vsyncpa [#allocation3], 1
    %973 = vsyncpa [#allocation5], 1

</llo_original>
